<compile_context>
chip_gen: v7x
topology: tpu7x:2x2x1
jax: 0.10.0
libtpu: 0.0.40
codegen_flags: <defaults>
</compile_context>

<pallas_src>
import math

import jax
import jax.numpy as jnp
from jax import lax
from jax.experimental import pallas as pl
from jax.experimental.pallas import tpu as pltpu

_VMEM_LIMIT = 32 * 1024 * 1024  # safe on v5e/v6e (128 MiB) and v7x (64 MiB physical)


def _qkv_proj_kernel(x_ref, w_ref, b_ref, q_ref, k_ref, v_ref):
    """Fused QKV projection: one MXU pass over the lane-dense [D, 3D] RHS."""
    d = q_ref.shape[-1]
    qkv = jnp.dot(x_ref[...], w_ref[...],
                  preferred_element_type=jnp.float32) + b_ref[...]
    q_ref[...] = qkv[:, :d].astype(q_ref.dtype)        # already scaled by 1/sqrt(D)
    k_ref[...] = qkv[:, d:2 * d].astype(k_ref.dtype)
    v_ref[...] = qkv[:, 2 * d:].astype(v_ref.dtype)


def _attn_kernel(q_ref, k_ref, v_ref, o_ref, acc_ref):
    """(Q @ K^T) @ V accumulated over KV tiles (module has no softmax)."""
    ki = pl.program_id(1)

    @pl.when(ki == 0)
    def _():
        acc_ref[...] = jnp.zeros_like(acc_ref)

    # scores = Q @ K^T : contract last dims directly so the transpose is
    # absorbed into the MXU (no explicit k.T / XLU transpose, no K-sized temp).
    scores = lax.dot_general(q_ref[...], k_ref[...],
                             (((1,), (1,)), ((), ())),
                             preferred_element_type=jnp.float32)

    # TODO(synk): nn.Dropout on attention_weights is identity in eval mode;
    # training-mode stochastic dropout (pltpu.prng_random_bits) is omitted.

    acc_ref[...] += jnp.dot(scores, v_ref[...],
                            preferred_element_type=jnp.float32)

    @pl.when(ki == pl.num_programs(1) - 1)
    def _():
        o_ref[...] = acc_ref[...].astype(o_ref.dtype)


def _pick_tile(s, max_tile=512):
    t = max_tile
    while t >= 8:
        if s % t == 0:
            return t
        t //= 2
    return s  # falls back to the full (unblocked) extent


def multi_head_attention(x, wq, bq, wk, bk, wv, bv,
                         *, block_rows=None, block_q=None, block_kv=None):
    """x: [S, D]; wq/wk/wv: [D, D] pre-transposed to (in, out); b*: [1, D]."""
    S, D = x.shape
    scale = 1.0 / math.sqrt(D)

    # Fuse the three projections into one [D, 3D] weight (one MXU pass, fewer
    # weight DMAs, lane-denser RHS) and fold 1/sqrt(D) into Wq / bq.
    w_qkv = jnp.concatenate([wq * scale, wk, wv], axis=1)   # [D, 3D]
    b_qkv = jnp.concatenate([bq * scale, bk, bv], axis=1)   # [1, 3D]

    ts = block_rows or _pick_tile(S)
    tq = block_q or _pick_tile(S)
    tk = block_kv or _pick_tile(S)

    # -------- Pass 1: fused QKV projection (grid over S rows, weights resident).
    q, k, v = pl.pallas_call(
        _qkv_proj_kernel,
        out_shape=(jax.ShapeDtypeStruct((S, D), jnp.float32),) * 3,
        grid_spec=pltpu.PrefetchScalarGridSpec(
            num_scalar_prefetch=0,
            grid=(S // ts,),
            in_specs=[
                pl.BlockSpec((ts, D), lambda i: (i, 0)),      # x row tile
                pl.BlockSpec((D, 3 * D), lambda i: (0, 0)),   # fused weights (resident)
                pl.BlockSpec((1, 3 * D), lambda i: (0, 0)),   # fused bias    (resident)
            ],
            out_specs=(
                pl.BlockSpec((ts, D), lambda i: (i, 0)),
                pl.BlockSpec((ts, D), lambda i: (i, 0)),
                pl.BlockSpec((ts, D), lambda i: (i, 0)),
            ),
        ),
        compiler_params=pltpu.CompilerParams(
            dimension_semantics=("parallel",),
            vmem_limit_bytes=_VMEM_LIMIT,
        ),
    )(x, w_qkv, b_qkv)

    # -------- Pass 2: tiled (Q K^T) V with a per-Q-tile f32 VMEM accumulator.
    return pl.pallas_call(
        _attn_kernel,
        out_shape=jax.ShapeDtypeStruct((S, D), x.dtype),
        grid_spec=pltpu.PrefetchScalarGridSpec(
            num_scalar_prefetch=0,
            grid=(S // tq, S // tk),
            in_specs=[
                pl.BlockSpec((tq, D), lambda qi, ki: (qi, 0)),  # Q tile (row-resident)
                pl.BlockSpec((tk, D), lambda qi, ki: (ki, 0)),  # K tile (streamed)
                pl.BlockSpec((tk, D), lambda qi, ki: (ki, 0)),  # V tile (streamed)
            ],
            out_specs=pl.BlockSpec((tq, D), lambda qi, ki: (qi, 0)),
            scratch_shapes=[pltpu.VMEM((tq, D), jnp.float32)],
        ),
        compiler_params=pltpu.CompilerParams(
            dimension_semantics=("parallel", "arbitrary"),
            vmem_limit_bytes=_VMEM_LIMIT,
        ),
    )(q, k, v)


def _reference(x, wq, bq, wk, bk, wv, bv):
    D = x.shape[-1]
    q = x @ wq + bq
    k = x @ wk + bk
    v = x @ wv + bv
    attn = (q @ k.T) / math.sqrt(D)
    return attn @ v


if __name__ == "__main__":
    def make_inputs(key, S, D):
        kx, kq, kk_, kv, kbq, kbk, kbv = jax.random.split(key, 7)
        bound = 1.0 / math.sqrt(D)
        x = jax.random.normal(kx, (S, D), dtype=jnp.float32)
        init_w = lambda k: jax.random.uniform(k, (D, D), jnp.float32, -bound, bound)
        init_b = lambda k: jax.random.uniform(k, (1, D), jnp.float32, -bound, bound)
        return (x, init_w(kq), init_b(kbq), init_w(kk_), init_b(kbk),
                init_w(kv), init_b(kbv))

    # Case 1: module-consistent small shape (seq=8, input_dim=32); grid (1, 1).
    args = make_inputs(jax.random.PRNGKey(0), 8, 32)
    out = jax.block_until_ready(multi_head_attention(*args))
    ref = _reference(*args)
    assert out.shape == (8, 32)
    assert jnp.allclose(out, ref, atol=1e-3, rtol=1e-3), \
        float(jnp.max(jnp.abs(out - ref)))

    # Case 2: larger seq to exercise the tiled grid + KV accumulator path.
    args2 = make_inputs(jax.random.PRNGKey(1), 256, 32)
    out2 = jax.block_until_ready(
        multi_head_attention(*args2, block_rows=128, block_q=64, block_kv=64))
    ref2 = _reference(*args2)
    assert out2.shape == (256, 32)
    assert jnp.allclose(out2, ref2, atol=1e-3, rtol=1e-3), \
        float(jnp.max(jnp.abs(out2 - ref2)))

    print("KERNEL_OK")
</pallas_src>

<mosaic_0001>
module attributes {stable_mosaic.version = 11 : i64} {
  func.func @_qkv_proj_kernel(%arg0: i32, %arg1: memref<8x32xf32, #tpu.memory_space<vmem>>, %arg2: memref<32x96xf32, #tpu.memory_space<vmem>>, %arg3: memref<1x96xf32, #tpu.memory_space<vmem>>, %arg4: memref<8x32xf32, #tpu.memory_space<vmem>>, %arg5: memref<8x32xf32, #tpu.memory_space<vmem>>, %arg6: memref<8x32xf32, #tpu.memory_space<vmem>>) attributes {dimension_semantics = [#tpu.dimension_semantics<parallel>], iteration_bounds = array<i64: 1>, scalar_prefetch = 0 : i64, scratch_operands = 0 : i64, tpu.core_type = #tpu.core_type<tc>, window_params = [{transform_indices = @transform_0, window_bounds = array<i64: 8, 32>}, {pipeline_mode = #tpu.pipeline_mode<synchronous>, transform_indices = @transform_1, window_bounds = array<i64: 32, 96>}, {pipeline_mode = #tpu.pipeline_mode<synchronous>, transform_indices = @transform_2, window_bounds = array<i64: 1, 96>}, {transform_indices = @transform_3, window_bounds = array<i64: 8, 32>}, {transform_indices = @transform_4, window_bounds = array<i64: 8, 32>}, {transform_indices = @transform_5, window_bounds = array<i64: 8, 32>}]} {
    %c0 = arith.constant 0 : index
    %c0_0 = arith.constant 0 : index
    %0 = vector.load %arg1[%c0, %c0_0] : memref<8x32xf32, #tpu.memory_space<vmem>>, vector<8x32xf32>
    %c0_1 = arith.constant 0 : index
    %c0_2 = arith.constant 0 : index
    %1 = vector.load %arg2[%c0_1, %c0_2] : memref<32x96xf32, #tpu.memory_space<vmem>>, vector<32x96xf32>
    %cst = arith.constant dense<0.000000e+00> : vector<8x96xf32>
    %2 = tpu.matmul %0, %1, %cst {dimension_numbers = #tpu.dot_dimension_numbers<[1], [0], [0], [1], [0, 0, 1, 1], [], []>} : vector<8x32xf32>, vector<32x96xf32>, vector<8x96xf32> -> vector<8x96xf32>
    %c0_3 = arith.constant 0 : index
    %c0_4 = arith.constant 0 : index
    %3 = vector.load %arg3[%c0_3, %c0_4] : memref<1x96xf32, #tpu.memory_space<vmem>>, vector<1x96xf32>
    %4 = vector.broadcast %3 : vector<1x96xf32> to vector<8x96xf32>
    %5 = arith.addf %2, %4 : vector<8x96xf32>
    %6 = vector.extract_strided_slice %5 {offsets = [0, 0], sizes = [8, 32], strides = [1, 1]} : vector<8x96xf32> to vector<8x32xf32>
    %c0_5 = arith.constant 0 : index
    %c0_6 = arith.constant 0 : index
    %7 = vector.load %arg4[%c0_5, %c0_6] : memref<8x32xf32, #tpu.memory_space<vmem>>, vector<8x32xf32>
    tpu.vector_store %arg4[%c0_5, %c0_6], %6 {strides = array<i32>} : memref<8x32xf32, #tpu.memory_space<vmem>>, vector<8x32xf32>,
    %8 = vector.extract_strided_slice %5 {offsets = [0, 32], sizes = [8, 32], strides = [1, 1]} : vector<8x96xf32> to vector<8x32xf32>
    %c0_7 = arith.constant 0 : index
    %c0_8 = arith.constant 0 : index
    %9 = vector.load %arg5[%c0_7, %c0_8] : memref<8x32xf32, #tpu.memory_space<vmem>>, vector<8x32xf32>
    tpu.vector_store %arg5[%c0_7, %c0_8], %8 {strides = array<i32>} : memref<8x32xf32, #tpu.memory_space<vmem>>, vector<8x32xf32>,
    %10 = vector.extract_strided_slice %5 {offsets = [0, 64], sizes = [8, 32], strides = [1, 1]} : vector<8x96xf32> to vector<8x32xf32>
    %c0_9 = arith.constant 0 : index
    %c0_10 = arith.constant 0 : index
    %11 = vector.load %arg6[%c0_9, %c0_10] : memref<8x32xf32, #tpu.memory_space<vmem>>, vector<8x32xf32>
    tpu.vector_store %arg6[%c0_9, %c0_10], %10 {strides = array<i32>} : memref<8x32xf32, #tpu.memory_space<vmem>>, vector<8x32xf32>,
    return
  }
  func.func @transform_0(%arg0: i32) -> (i32, i32) {
    %c0_i32 = arith.constant 0 : i32
    %c0_i32_0 = arith.constant 0 : i32
    return %arg0, %c0_i32 : i32, i32
  }
  func.func @transform_1(%arg0: i32) -> (i32, i32) {
    %c0_i32 = arith.constant 0 : i32
    %c0_i32_0 = arith.constant 0 : i32
    %c0_i32_1 = arith.constant 0 : i32
    return %c0_i32, %c0_i32_0 : i32, i32
  }
  func.func @transform_2(%arg0: i32) -> (i32, i32) {
    %c0_i32 = arith.constant 0 : i32
    %c0_i32_0 = arith.constant 0 : i32
    %c0_i32_1 = arith.constant 0 : i32
    return %c0_i32, %c0_i32_0 : i32, i32
  }
  func.func @transform_3(%arg0: i32) -> (i32, i32) {
    %c0_i32 = arith.constant 0 : i32
    %c0_i32_0 = arith.constant 0 : i32
    return %arg0, %c0_i32 : i32, i32
  }
  func.func @transform_4(%arg0: i32) -> (i32, i32) {
    %c0_i32 = arith.constant 0 : i32
    %c0_i32_0 = arith.constant 0 : i32
    return %arg0, %c0_i32 : i32, i32
  }
  func.func @transform_5(%arg0: i32) -> (i32, i32) {
    %c0_i32 = arith.constant 0 : i32
    %c0_i32_0 = arith.constant 0 : i32
    return %arg0, %c0_i32 : i32, i32
  }
}

</mosaic_0001>

<llo_original>
// kernel: tpu_custom_call.1
$region0: #{tpu_custom_call.1}
  #allocation0 [shape = 'u32[]', space=smem, size = 0x4, offset = 0x4, fixed_abs, tag = 'smem constant byte address 0x4 - core index']
  #allocation1 [shape = 'u32[144,128]{1,0:T(1,128)}', space=vmem, size = 0x12000, scoped, tag = 'internal scratch']
  %s0 = inlined_call_operand.hbm [shape: f32[8,32], index: 0, kind: input, shape index: {}]
  %s1 = inlined_call_operand.hbm [shape: f32[32,96], index: 1, kind: input, shape index: {}]
  %s2 = inlined_call_operand.vmem [shape: f32[1,96], index: 2, kind: input, shape index: {}]
  %s3 = inlined_call_operand.hbm [shape: f32[8,32], index: 3, kind: output, shape index: {0}]
  %s4 = inlined_call_operand.hbm [shape: f32[8,32], index: 4, kind: output, shape index: {1}]
  %s5 = inlined_call_operand.hbm [shape: f32[8,32], index: 5, kind: output, shape index: {2}]
  %6 = xla_tuple %s3, %s4, %s5
  %s7 = sld [smem:[#allocation0]]
  $region46: #{tpu_custom_call.1} parent=0
    _
  %s9 = ssub.s32 1, %s7
  %s10 = scalar_select 0, %s9, %s7
  $region1: #{tpu_custom_call.1} parent=0
    #allocation2 [shape = 'u8[4096]{0}', space=vmem, size = 0x1000, scoped, tag = 'input window, operand 0, single buffered']
    #allocation3 [shape = 's32[1]{0}', space=sflag, size = 0x4, scoped, tag = 'scoped memory for tpu_custom_call.1']
    #allocation4 [shape = 's32[1]{0}', space=sflag, size = 0x4, scoped, tag = 'scoped memory for tpu_custom_call.1']
    #allocation5 [shape = 'u8[16384]{0}', space=vmem, size = 0x4000, scoped, tag = 'input window, operand 1, single buffered']
    #allocation6 [shape = 's32[1]{0}', space=sflag, size = 0x4, scoped, tag = 'scoped memory for tpu_custom_call.1']
    #allocation7 [shape = 'u8[4096]{0}', space=vmem, size = 0x1000, scoped, tag = 'output window, operand 0, single buffered']
    #allocation8 [shape = 'u8[4096]{0}', space=vmem, size = 0x1000, scoped, tag = 'output window, operand 1, single buffered']
    #allocation9 [shape = 's32[1]{0}', space=sflag, size = 0x4, scoped, tag = 'scoped memory for tpu_custom_call.1']
    #allocation10 [shape = 'u8[4096]{0}', space=vmem, size = 0x1000, scoped, tag = 'output window, operand 2, single buffered']
    %11 = vsyncpa [#allocation3], 0
    %12 = vsyncpa [#allocation6], 0
    %13 = vsyncpa [#allocation4], 0
    %14 = vsyncpa [#allocation9], 0
    // Predicated region
    $region2: #{tpu_custom_call.1} parent=1 // pred_check
      _
    $region3: #{tpu_custom_call.1} parent=1 // pred_check_branch
      %16 = sbr.rel (0) target = $region5
    $region4: #{tpu_custom_call.1} parent=1 // pred_region
      %s18 = ssub.s32 128, 128
      %19 = vsyncadd [#allocation3], %s18
      %s21 = sshll.u32 [#allocation2], 4
      %s22 = int_to_ptr.vmem [resolvable:$true] %s21
      %24 = dma.hbm_to_vmem [thread:$0]  %s0, 128, %s22, [#allocation3]
    $region5: #{tpu_custom_call.1} parent=1 // pred_fallthru
      _
    // Predicated region
    $region6: #{tpu_custom_call.1} parent=1 // pred_check
      _
    $region7: #{tpu_custom_call.1} parent=1 // pred_check_branch
      %26 = sbr.rel (0) target = $region9
    $region8: #{tpu_custom_call.1} parent=1 // pred_region
      %s28 = ssub.s32 512, 512
      %29 = vsyncadd [#allocation6], %s28
      %s30 = sshll.u32 [#allocation5], 4
      %s31 = int_to_ptr.vmem [resolvable:$true] %s30
      %36 = dma.hbm_to_vmem [thread:$0]  %s1, 512, %s31, [#allocation6], 128, 128, 8
    $region9: #{tpu_custom_call.1} parent=1 // pred_fallthru
      _
    // Predicated region
    $region10: #{tpu_custom_call.1} parent=1 // pred_check
      _
    $region11: #{tpu_custom_call.1} parent=1 // pred_check_branch
      %38 = sbr.rel (0) target = $region13
    $region12: #{tpu_custom_call.1} parent=1 // pred_region
      _
    $region13: #{tpu_custom_call.1} parent=1 // pred_fallthru
      _
    // Predicated region
    $region14: #{tpu_custom_call.1} parent=1 // pred_check
      _
    $region15: #{tpu_custom_call.1} parent=1 // pred_check_branch
      %40 = sbr.rel (0) target = $region17
    $region16: #{tpu_custom_call.1} parent=1 // pred_region
      %41 = dma.done [#allocation3], 128
    $region17: #{tpu_custom_call.1} parent=1 // pred_fallthru
      _
    // Predicated region
    $region18: #{tpu_custom_call.1} parent=1 // pred_check
      _
    $region19: #{tpu_custom_call.1} parent=1 // pred_check_branch
      %43 = sbr.rel (0) target = $region21
    $region20: #{tpu_custom_call.1} parent=1 // pred_region
      %44 = dma.done [#allocation6], 512
    $region21: #{tpu_custom_call.1} parent=1 // pred_fallthru
      _
    %v45 = vld [vmem:[#allocation2] sm:$0xff]
    %v46 = vld [vmem:[#allocation5] sm:$0xff]
    %v47 = vld [vmem:[#allocation5 + $0x8] sm:$0xff]
    %v48 = vld [vmem:[#allocation5 + $0x10] sm:$0xff]
    %v49 = vld [vmem:[#allocation5 + $0x18] sm:$0xff]
    %v50 = vld [vmem:[%s2] sm:$0x1]
    %v52 = vlaneseq
    %v53 = vshrl.u32 %v52, 7
    %v54 = vsub.s32 0, %v53
    %v55 = vrot.slane %v50, %v54
    %vm57 = vcmask 261120
    %v59 = vsel %vm57, %v45, 0
    %61 = vmatprep.subr.mxu0 0.0
    %62 = vmatpush1.msra.mxu0 %v46
    %63 = vmatprep.subr.mxu0 0.0
    %64 = vmatpush1.msra.mxu0 %v47
    %65 = vmatprep.subr.mxu0 0.0
    %66 = vmatpush1.msra.mxu0 %v48
    %67 = vmatprep.subr.mxu0 0.0
    %68 = vmatpush1.msra.mxu0 %v49
    %69 = vmatprep.subr.mxu0 0.0
    %70 = vmatpush1.msra.mxu0 0.0
    %71 = vmatprep.subr.mxu0 0.0
    %72 = vmatpush1.msra.mxu0 0.0
    %73 = vmatprep.subr.mxu0 0.0
    %74 = vmatpush1.msra.mxu0 0.0
    %75 = vmatprep.subr.mxu0 0.0
    %76 = vmatpush1.msra.mxu0 0.0
    %77 = vmatprep.subr.mxu0 0.0
    %78 = vmatpush1.msra.mxu0 0.0
    %79 = vmatprep.subr.mxu0 0.0
    %80 = vmatpush1.msra.mxu0 0.0
    %81 = vmatprep.subr.mxu0 0.0
    %82 = vmatpush1.msra.mxu0 0.0
    %83 = vmatprep.subr.mxu0 0.0
    %84 = vmatpush1.msra.mxu0 0.0
    %85 = vmatprep.subr.mxu0 0.0
    %86 = vmatpush1.msra.mxu0 0.0
    %87 = vmatprep.subr.mxu0 0.0
    %88 = vmatpush1.msra.mxu0 0.0
    %89 = vmatprep.subr.mxu0 0.0
    %90 = vmatpush1.msra.mxu0 0.0
    %91 = vmatprep.subr.mxu0 0.0
    %92 = vmatpush1.msra.mxu0 0.0
    %93 = vmatprep.subr.mxu0 0.0
    %94 = vmatpush1.msra.mxu0 0.0
    %95 = vmatprep.subr.mxu0 0.0
    %96 = vmatpush1.msra.mxu0 0.0
    %97 = vmatprep.subr.mxu0 0.0
    %98 = vmatpush1.msra.mxu0 0.0
    %99 = vmatprep.subr.mxu0 0.0
    %100 = vmatpush1.msra.mxu0 0.0
    %101 = vmatprep.subr.mxu0 0.0
    %102 = vmatpush1.msra.mxu0 0.0
    %103 = vmatprep.subr.mxu0 0.0
    %104 = vmatpush1.msra.mxu0 0.0
    %105 = vmatprep.subr.mxu0 0.0
    %106 = vmatpush1.msra.mxu0 0.0
    %107 = vmatprep.subr.mxu0 0.0
    %108 = vmatpush1.msra.mxu0 0.0
    %109 = vmatprep.subr.mxu0 0.0
    %110 = vmatpush1.msra.mxu0 0.0
    %111 = vmatprep.subr.mxu0 0.0
    %112 = vmatpush1.msra.mxu0 0.0
    %113 = vmatprep.subr.mxu0 0.0
    %114 = vmatpush1.msra.mxu0 0.0
    %115 = vmatprep.subr.mxu0 0.0
    %116 = vmatpush1.msra.mxu0 0.0
    %117 = vmatprep.subr.mxu0 0.0
    %118 = vmatpush1.msra.mxu0 0.0
    %119 = vmatprep.subr.mxu0 0.0
    %120 = vmatpush1.msra.mxu0 0.0
    %121 = vmatprep.subr.mxu0 0.0
    %122 = vmatpush1.msra.mxu0 0.0
    %123 = vmatprep.subr.mxu0 0.0
    %124 = vmatpush1.msra.mxu0 0.0
    %125 = vmatprep.mubr.f32.mxu0 0.0
    %126 = vmatmul.mubr.f32.gmra.mrb[0].mxu0 %v59
    %v127 = vpop.f32.mrb[0].mxu0
    %v128 = vadd.f32 %v55, %v127
    %v129 = vpop.f32.mrb[0].mxu0
    %130 = vdwg.mxu0
    %131 = vst.msk [vmem:[#allocation7] sm:$0xff] %vm57, %v128
    %133 = vrot.lane.b32.xlu0 %v128, 96
    %v134 = vpop.permute.xlu0 %133
    %136 = vst.msk [vmem:[#allocation8] sm:$0xff] %vm57, %v134
    %137 = vrot.lane.b32.xlu0 %v128, 64
    %v138 = vpop.permute.xlu0 %137
    %140 = vst.msk [vmem:[#allocation10] sm:$0xff] %vm57, %v138
    // Predicated region
    $region22: #{tpu_custom_call.1} parent=1 // pred_check
      _
    $region23: #{tpu_custom_call.1} parent=1 // pred_check_branch
      %142 = sbr.rel (0) target = $region25
    $region24: #{tpu_custom_call.1} parent=1 // pred_region
      %s144 = ssub.s32 128, 128
      %145 = vsyncadd [#allocation4], %s144
      %s147 = sshll.u32 [#allocation7], 4
      %s148 = int_to_ptr.vmem [resolvable:$true] %s147
      %150 = dma.vmem_to_hbm [thread:$0]  %s148, 128, %s3, [#allocation4]
    $region25: #{tpu_custom_call.1} parent=1 // pred_fallthru
      _
    // Predicated region
    $region26: #{tpu_custom_call.1} parent=1 // pred_check
      _
    $region27: #{tpu_custom_call.1} parent=1 // pred_check_branch
      %152 = sbr.rel (0) target = $region29
    $region28: #{tpu_custom_call.1} parent=1 // pred_region
      %s154 = ssub.s32 128, 128
      %155 = vsyncadd [#allocation9], %s154
      %s157 = sshll.u32 [#allocation8], 4
      %s158 = int_to_ptr.vmem [resolvable:$true] %s157
      %160 = dma.vmem_to_hbm [thread:$0]  %s158, 128, %s4, [#allocation9]
    $region29: #{tpu_custom_call.1} parent=1 // pred_fallthru
      _
    // Predicated region
    $region30: #{tpu_custom_call.1} parent=1 // pred_check
      _
    $region31: #{tpu_custom_call.1} parent=1 // pred_check_branch
      %162 = sbr.rel (0) target = $region33
    $region32: #{tpu_custom_call.1} parent=1 // pred_region
      %s164 = ssub.s32 128, 128
      %165 = vsyncadd [#allocation9], %s164
      %s167 = sshll.u32 [#allocation10], 4
      %s168 = int_to_ptr.vmem [resolvable:$true] %s167
      %170 = dma.vmem_to_hbm [thread:$0]  %s168, 128, %s5, [#allocation9]
    $region33: #{tpu_custom_call.1} parent=1 // pred_fallthru
      _
    // Predicated region
    $region34: #{tpu_custom_call.1} parent=1 // pred_check
      _
    $region35: #{tpu_custom_call.1} parent=1 // pred_check_branch
      %172 = sbr.rel (0) target = $region37
    $region36: #{tpu_custom_call.1} parent=1 // pred_region
      %173 = dma.done [#allocation4], 128
    $region37: #{tpu_custom_call.1} parent=1 // pred_fallthru
      _
    // Predicated region
    $region38: #{tpu_custom_call.1} parent=1 // pred_check
      _
    $region39: #{tpu_custom_call.1} parent=1 // pred_check_branch
      %175 = sbr.rel (0) target = $region41
    $region40: #{tpu_custom_call.1} parent=1 // pred_region
      %176 = dma.done [#allocation9], 128
    $region41: #{tpu_custom_call.1} parent=1 // pred_fallthru
      _
    // Predicated region
    $region42: #{tpu_custom_call.1} parent=1 // pred_check
      _
    $region43: #{tpu_custom_call.1} parent=1 // pred_check_branch
      %178 = sbr.rel (0) target = $region45
    $region44: #{tpu_custom_call.1} parent=1 // pred_region
      %179 = dma.done [#allocation9], 128
    $region45: #{tpu_custom_call.1} parent=1 // pred_fallthru
      _
    %180 = vsyncpa [#allocation3], 1
    %181 = vsyncpa [#allocation6], 1
    %182 = vsyncpa [#allocation4], 1
    %183 = vsyncpa [#allocation9], 1

</llo_original>
